<compile_context>
chip_gen: v7x
topology: tpu7x:2x2x1
jax: 0.10.0
libtpu: 0.0.40
codegen_flags: <defaults>
</compile_context>

<pallas_src>
import functools

import jax
import jax.numpy as jnp
from jax.experimental import pallas as pl
from jax.experimental.pallas import tpu as pltpu

# 48 MiB scoped VMEM: under v7x's 64 MiB physical VMEM, safe on v5e/v6e (128 MiB).
_VMEM_LIMIT = 48 * 1024 * 1024


def _cparams(*sems):
    return pltpu.CompilerParams(dimension_semantics=sems,
                                vmem_limit_bytes=_VMEM_LIMIT)


def _round_up(x, m):
    return (x + m - 1) // m * m


# ----------------------------------------------------------------------------
# Kernel A: tiled fused matmul   out = relu?((x @ w) * scale + bias)
#   grid = (M/tm, N/tn, K/tk), f32 VMEM accumulator, epilogue on last K step.
# ----------------------------------------------------------------------------
def _matmul_bn_kernel(x_ref, w_ref, s_ref, b_ref, o_ref, acc_ref, *, relu):
    @pl.when(pl.program_id(2) == 0)
    def _init():
        acc_ref[...] = jnp.zeros_like(acc_ref)

    acc_ref[...] += jnp.dot(x_ref[...], w_ref[...],
                            preferred_element_type=jnp.float32)

    @pl.when(pl.program_id(2) == pl.num_programs(2) - 1)
    def _epilogue():
        out = acc_ref[...] * s_ref[...] + b_ref[...]
        if relu:
            out = jnp.maximum(out, 0.0)
        o_ref[...] = out.astype(o_ref.dtype)


def fused_matmul(x, w, scale, bias, *, relu=False, out_dtype=jnp.bfloat16):
    """(M,K)@(K,N) * scale + bias [ReLU], bf16 MXU path, f32 accumulation."""
    M, K = x.shape
    _, N = w.shape
    x = x.astype(jnp.bfloat16)
    w = w.astype(jnp.bfloat16)
    Kp = _round_up(K, 128)                     # MXU-aligned contraction
    Mp = _round_up(M, 8)
    if Kp != K:
        x = jnp.pad(x, ((0, 0), (0, Kp - K)))
        w = jnp.pad(w, ((0, Kp - K), (0, 0)))
    if Mp != M:
        x = jnp.pad(x, ((0, Mp - M), (0, 0)))
    s2 = scale.reshape(1, N).astype(jnp.float32)
    b2 = bias.reshape(1, N).astype(jnp.float32)
    tm = next((t for t in (128, 64, 32, 16, 8) if Mp % t == 0), Mp)
    tn = next((t for t in (256, 128) if N % t == 0), N)
    tk = next((t for t in (512, 256, 128) if Kp % t == 0), Kp)
    grid = (Mp // tm, N // tn, Kp // tk)
    cost = pl.CostEstimate(
        flops=2 * Mp * N * Kp, transcendentals=0,
        bytes_accessed=int((Mp * Kp + Kp * N + Mp * N) * 2 + 8 * N))
    out = pl.pallas_call(
        functools.partial(_matmul_bn_kernel, relu=relu),
        grid=grid,
        in_specs=[
            pl.BlockSpec((tm, tk), lambda i, j, k: (i, k)),
            pl.BlockSpec((tk, tn), lambda i, j, k: (k, j)),
            pl.BlockSpec((1, tn), lambda i, j, k: (0, j)),
            pl.BlockSpec((1, tn), lambda i, j, k: (0, j)),
        ],
        out_specs=pl.BlockSpec((tm, tn), lambda i, j, k: (i, j)),
        out_shape=jax.ShapeDtypeStruct((Mp, N), out_dtype),
        scratch_shapes=[pltpu.VMEM((tm, tn), jnp.float32)],
        compiler_params=_cparams("parallel", "parallel", "arbitrary"),
        cost_estimate=cost,
    )(x, w, s2, b2)
    return out[:M] if Mp != M else out


# ----------------------------------------------------------------------------
# Kernel B: tap-wise KxK stride-1 conv + BN (+residual) (+ReLU).
#   Padded activation flattened to rows (N, Hp*Wp, Cin); each tap is a constant
#   row offset, so the kernel accumulates kh*kw row-shifted (M, Cin)@(Cin, tn)
#   matmuls in f32 — no im2col materialization, ~1x HBM traffic.
# ----------------------------------------------------------------------------
def _conv_tap_kernel(x_ref, w_ref, s_ref, b_ref, *rest, offsets, r_out, relu,
                     has_residual):
    if has_residual:
        r_ref, o_ref = rest
    else:
        (o_ref,) = rest
    tn = w_ref.shape[2]
    acc = jnp.zeros((r_out, tn), jnp.float32)
    for t, d in enumerate(offsets):
        acc = acc + jnp.dot(x_ref[0, d:d + r_out, :], w_ref[t],
                            preferred_element_type=jnp.float32)
    acc = acc * s_ref[...] + b_ref[...]
    if has_residual:
        acc = acc + r_ref[0].astype(jnp.float32)
    if relu:
        acc = jnp.maximum(acc, 0.0)
    o_ref[0] = acc.astype(o_ref.dtype)


def conv_tap_bn(x_nhwc, w_oihw, bn, *, relu, residual=None):
    """'same' stride-1 KxK conv + folded BN (+residual) (+ReLU)."""
    N, H, W, Cin = x_nhwc.shape
    Cout, _, kh, kw = w_oihw.shape
    ph, pw = kh // 2, kw // 2
    Wp = W + 2 * pw
    Hp = H + kh                       # ph top, (kh-ph) bottom (1 margin row)
    xpad = jnp.pad(x_nhwc.astype(jnp.bfloat16),
                   ((0, 0), (ph, kh - ph), (pw, pw), (0, 0)))
    r_in = Hp * Wp
    r_out = H * Wp                    # valid cols are [0, W); rest is junk
    xflat = xpad.reshape(N, r_in, Cin)
    offsets = tuple(i * Wp + j for i in range(kh) for j in range(kw))
    wt = jnp.transpose(w_oihw, (2, 3, 1, 0)).reshape(
        kh * kw, Cin, Cout).astype(jnp.bfloat16)
    scale, bias = _bn_fold(bn)
    s2 = scale.reshape(1, Cout).astype(jnp.float32)
    b2 = bias.reshape(1, Cout).astype(jnp.float32)
    tn = next((t for t in (256, 128) if Cout % t == 0), Cout)
    grid = (N, Cout // tn)

    in_specs = [
        pl.BlockSpec((1, r_in, Cin), lambda n, j: (n, 0, 0)),
        pl.BlockSpec((kh * kw, Cin, tn), lambda n, j: (0, 0, j)),
        pl.BlockSpec((1, tn), lambda n, j: (0, j)),
        pl.BlockSpec((1, tn), lambda n, j: (0, j)),
    ]
    args = [xflat, wt, s2, b2]
    has_res = residual is not None
    if has_res:
        rpad = jnp.pad(residual.astype(jnp.bfloat16),
                       ((0, 0), (0, 0), (0, Wp - W), (0, 0)))
        args.append(rpad.reshape(N, r_out, Cout))
        in_specs.append(pl.BlockSpec((1, r_out, tn), lambda n, j: (n, 0, j)))

    cost = pl.CostEstimate(
        flops=2 * N * r_out * Cout * Cin * kh * kw, transcendentals=0,
        bytes_accessed=int((N * r_in * Cin + kh * kw * Cin * Cout
                            + N * r_out * Cout * (2 if has_res else 1)) * 2))
    out = pl.pallas_call(
        functools.partial(_conv_tap_kernel, offsets=offsets, r_out=r_out,
                          relu=relu, has_residual=has_res),
        grid=grid,
        in_specs=in_specs,
        out_specs=pl.BlockSpec((1, r_out, tn), lambda n, j: (n, 0, j)),
        out_shape=jax.ShapeDtypeStruct((N, r_out, Cout), jnp.bfloat16),
        compiler_params=_cparams("parallel", "parallel"),
        cost_estimate=cost,
    )(*args)
    return out.reshape(N, H, Wp, Cout)[:, :, :W, :]


# ----------------------------------------------------------------------------
# MaxPool 3x3 / stride 2 / pad 1: padded activation passed once, the 9 shifted
# views are taken inside the kernel (no 9x HBM stack); stride handled by a
# cheap wrapper-side subsample of the stride-1 result.
# ----------------------------------------------------------------------------
def _maxpool_kernel(x_ref, o_ref, *, offsets, r_out):
    m = x_ref[0, 0:r_out, :]
    for d in offsets[1:]:
        m = jnp.maximum(m, x_ref[0, d:d + r_out, :])
    o_ref[0] = m


def maxpool2d_3x3_s2(x):
    N, H, W, C = x.shape
    k, s, p = 3, 2, 1
    Ho = (H + 2 * p - k) // s + 1
    Wo = (W + 2 * p - k) // s + 1
    Wp = W + 2 * p
    neg = float(jnp.finfo(x.dtype).min)
    xpad = jnp.pad(x, ((0, 0), (p, k - p), (p, p), (0, 0)),
                   constant_values=neg)
    r_in = (H + k) * Wp
    r_out = H * Wp
    offsets = tuple(i * Wp + j for i in range(k) for j in range(k))
    xflat = xpad.reshape(N, r_in, C)
    out = pl.pallas_call(
        functools.partial(_maxpool_kernel, offsets=offsets, r_out=r_out),
        grid=(N,),
        in_specs=[pl.BlockSpec((1, r_in, C), lambda n: (n, 0, 0))],
        out_specs=pl.BlockSpec((1, r_out, C), lambda n: (n, 0, 0)),
        out_shape=jax.ShapeDtypeStruct((N, r_out, C), x.dtype),
        compiler_params=_cparams("parallel"),
    )(xflat)
    out = out.reshape(N, H, Wp, C)
    return out[:, 0:s * Ho:s, 0:s * Wo:s, :]


# ----------------------------------------------------------------------------
# Global average pool
# ----------------------------------------------------------------------------
def _avgpool_kernel(x_ref, o_ref):
    o_ref[...] = jnp.mean(x_ref[...].astype(jnp.float32), axis=1,
                          keepdims=True)


def global_avgpool(x_nhwc):
    N, H, W, C = x_nhwc.shape
    xr = x_nhwc.reshape(N, H * W, C)
    out = pl.pallas_call(
        _avgpool_kernel,
        grid=(N,),
        in_specs=[pl.BlockSpec((1, H * W, C), lambda n: (n, 0, 0))],
        out_specs=pl.BlockSpec((1, 1, C), lambda n: (n, 0, 0)),
        out_shape=jax.ShapeDtypeStruct((N, 1, C), jnp.float32),
        compiler_params=_cparams("parallel"),
    )(xr)
    return out.reshape(N, C)


# ----------------------------------------------------------------------------
# Plain-JAX glue: BN folding, conv1 im2col (tiny, K padded to 256), 1x1 conv
# ----------------------------------------------------------------------------
def _bn_fold(bn, eps=1e-5):
    gamma, beta, mean, var = bn
    scale = gamma / jnp.sqrt(var + eps)
    bias = beta - mean * scale
    return scale, bias


def _im2col(x_nhwc, kh, kw, stride, pad):
    N, H, W, C = x_nhwc.shape
    xp = jnp.pad(x_nhwc, ((0, 0), (pad, pad), (pad, pad), (0, 0)))
    Ho = (H + 2 * pad - kh) // stride + 1
    Wo = (W + 2 * pad - kw) // stride + 1
    cols = []
    for i in range(kh):
        for j in range(kw):
            cols.append(xp[:, i:i + stride * Ho:stride,
                           j:j + stride * Wo:stride, :])
    patches = jnp.stack(cols, axis=3)                     # (N,Ho,Wo,kh*kw,C)
    return patches.reshape(N * Ho * Wo, kh * kw * C), (N, Ho, Wo)


def conv_im2col_bn(x_nhwc, w_oihw, bn, *, stride, pad, relu):
    """7x7 stem conv: im2col (bf16, K 147 -> padded 256) + fused matmul."""
    Cout, Cin, kh, kw = w_oihw.shape
    patches, (N, Ho, Wo) = _im2col(x_nhwc.astype(jnp.bfloat16), kh, kw,
                                   stride, pad)
    wmat = jnp.transpose(w_oihw, (2, 3, 1, 0)).reshape(kh * kw * Cin, Cout)
    scale, bias = _bn_fold(bn)
    out = fused_matmul(patches, wmat, scale, bias, relu=relu,
                       out_dtype=jnp.bfloat16)
    return out.reshape(N, Ho, Wo, Cout)


def conv1x1_bn(x_nhwc, w_oihw, bn, *, stride, relu):
    """1x1 (downsample) conv: subsample then plain fused matmul (no im2col)."""
    xs = x_nhwc[:, ::stride, ::stride, :]
    N, Ho, Wo, Cin = xs.shape
    Cout = w_oihw.shape[0]
    wmat = w_oihw.reshape(Cout, Cin).T
    scale, bias = _bn_fold(bn)
    out = fused_matmul(xs.reshape(N * Ho * Wo, Cin), wmat, scale, bias,
                       relu=relu, out_dtype=jnp.bfloat16)
    return out.reshape(N, Ho, Wo, Cout)


# ----------------------------------------------------------------------------
# BasicBlock / ResNet forward
# ----------------------------------------------------------------------------
def basic_block(x, p):
    s = p['stride']
    out = conv_tap_bn(x, p['conv1_w'], p['bn1'], relu=True)
    if s > 1:
        out = out[:, ::s, ::s, :]     # stride-2 conv == stride-1 conv subsampled
    if 'down_w' in p:
        identity = conv1x1_bn(x, p['down_w'], p['down_bn'], stride=s,
                              relu=False)
    else:
        identity = x
    # conv2 + bn2 + residual add + relu fused into one tap-conv kernel
    out = conv_tap_bn(out, p['conv2_w'], p['bn2'], relu=True,
                      residual=identity)
    return out


def resnet_forward(x_nchw, params):
    x = jnp.transpose(x_nchw, (0, 2, 3, 1)).astype(jnp.bfloat16)  # NCHW->NHWC
    x = conv_im2col_bn(x, params['conv1_w'], params['bn1'],
                       stride=2, pad=3, relu=True)
    x = maxpool2d_3x3_s2(x)
    for layer_name in ('layer1', 'layer2', 'layer3', 'layer4'):
        for blk in params[layer_name]:
            x = basic_block(x, blk)
    x = global_avgpool(x)                                   # (N, 512) f32
    fc_w, fc_b = params['fc_w'], params['fc_b']
    out = fused_matmul(x, fc_w.T, jnp.ones((fc_w.shape[0],), jnp.float32),
                       fc_b, relu=False, out_dtype=jnp.float32)
    return out


# ----------------------------------------------------------------------------
# Deterministic parameter construction (BasicBlock, expansion = 1)
# ----------------------------------------------------------------------------
def _init_bn(c):
    # (gamma, beta, running_mean, running_var)
    return (jnp.ones((c,), jnp.float32), jnp.zeros((c,), jnp.float32),
            jnp.zeros((c,), jnp.float32), jnp.ones((c,), jnp.float32))


def _make_layer_params(key, in_c, out_c, num_blocks, stride):
    # Reproduce the reference off-by-one: total blocks = 1 + max(0, num_blocks-2)
    n_actual = 1 + max(0, num_blocks - 2)
    strides = [stride] + [1] * (n_actual - 1)
    blocks = []
    c = in_c
    for s in strides:
        key, k1, k2, k3 = jax.random.split(key, 4)
        p = {
            'conv1_w': jax.random.normal(k1, (out_c, c, 3, 3), jnp.float32) * 0.05,
            'bn1': _init_bn(out_c),
            'conv2_w': jax.random.normal(k2, (out_c, out_c, 3, 3), jnp.float32) * 0.05,
            'bn2': _init_bn(out_c),
            'stride': s,
        }
        if s != 1 or c != out_c:
            p['down_w'] = jax.random.normal(k3, (out_c, c, 1, 1), jnp.float32) * 0.05
            p['down_bn'] = _init_bn(out_c)
        blocks.append(p)
        c = out_c
    return key, blocks, c


def make_resnet_params(key, num_blocks=(2, 2, 2, 2), num_classes=10):
    key, k0 = jax.random.split(key)
    params = {
        'conv1_w': jax.random.normal(k0, (64, 3, 7, 7), jnp.float32) * 0.05,
        'bn1': _init_bn(64),
    }
    in_c = 64
    for name, out_c, nb, st in (('layer1', 64, num_blocks[0], 1),
                                ('layer2', 128, num_blocks[1], 2),
                                ('layer3', 256, num_blocks[2], 2),
                                ('layer4', 512, num_blocks[3], 2)):
        key, blocks, in_c = _make_layer_params(key, in_c, out_c, nb, st)
        params[name] = blocks
    key, kw, kb = jax.random.split(key, 3)
    params['fc_w'] = jax.random.normal(kw, (num_classes, 512), jnp.float32) * 0.05
    params['fc_b'] = jax.random.normal(kb, (num_classes,), jnp.float32) * 0.05
    return params


# ----------------------------------------------------------------------------
if __name__ == "__main__":
    key = jax.random.PRNGKey(0)
    key, kx, kp = jax.random.split(key, 3)
    x = jax.random.normal(kx, (2, 3, 32, 32), jnp.float32)   # NCHW input
    params = make_resnet_params(kp)

    out = resnet_forward(x, params)
    out = jax.block_until_ready(out)
    assert out.shape == (2, 10), out.shape
    assert jnp.all(jnp.isfinite(out))
    print("KERNEL_OK")
</pallas_src>

<mosaic_0001>
module attributes {stable_mosaic.version = 11 : i64} {
  func.func @_matmul_bn_kernel(%arg0: i32, %arg1: i32, %arg2: i32, %arg3: memref<128x256xbf16, #tpu.memory_space<vmem>>, %arg4: memref<256x64xbf16, #tpu.memory_space<vmem>>, %arg5: memref<1x64xf32, #tpu.memory_space<vmem>>, %arg6: memref<1x64xf32, #tpu.memory_space<vmem>>, %arg7: memref<128x64xbf16, #tpu.memory_space<vmem>>, %arg8: memref<128x64xf32, #tpu.memory_space<vmem>>) attributes {dimension_semantics = [#tpu.dimension_semantics<parallel>, #tpu.dimension_semantics<parallel>, #tpu.dimension_semantics<arbitrary>], iteration_bounds = array<i64: 4, 1, 1>, scalar_prefetch = 0 : i64, scratch_operands = 1 : i64, tpu.core_type = #tpu.core_type<tc>, window_params = [{transform_indices = @transform_0, window_bounds = array<i64: 128, 256>}, {transform_indices = @transform_1, window_bounds = array<i64: 256, 64>}, {transform_indices = @transform_2, window_bounds = array<i64: 1, 64>}, {transform_indices = @transform_3, window_bounds = array<i64: 1, 64>}, {transform_indices = @transform_4, window_bounds = array<i64: 128, 64>}]} {
    %c0_i32 = arith.constant 0 : i32
    %0 = arith.cmpi eq, %arg2, %c0_i32 : i32
    %1 = arith.extui %0 : i1 to i32
    %c0_i32_0 = arith.constant 0 : i32
    %2 = arith.cmpi ne, %1, %c0_i32_0 : i32
    scf.if %2 {
      %cst_10 = arith.constant 0.000000e+00 : f32
      %12 = vector.broadcast %cst_10 : f32 to vector<128x64xf32>
      %c0_11 = arith.constant 0 : index
      %c0_12 = arith.constant 0 : index
      %13 = vector.load %arg8[%c0_11, %c0_12] : memref<128x64xf32, #tpu.memory_space<vmem>>, vector<128x64xf32>
      tpu.vector_store %arg8[%c0_11, %c0_12], %12 {strides = array<i32>} : memref<128x64xf32, #tpu.memory_space<vmem>>, vector<128x64xf32>,
    } else {
    }
    %c0 = arith.constant 0 : index
    %c0_1 = arith.constant 0 : index
    %3 = vector.load %arg8[%c0, %c0_1] : memref<128x64xf32, #tpu.memory_space<vmem>>, vector<128x64xf32>
    %c0_2 = arith.constant 0 : index
    %c0_3 = arith.constant 0 : index
    %4 = vector.load %arg3[%c0_2, %c0_3] : memref<128x256xbf16, #tpu.memory_space<vmem>>, vector<128x256xbf16>
    %c0_4 = arith.constant 0 : index
    %c0_5 = arith.constant 0 : index
    %5 = vector.load %arg4[%c0_4, %c0_5] : memref<256x64xbf16, #tpu.memory_space<vmem>>, vector<256x64xbf16>
    %cst = arith.constant dense<0.000000e+00> : vector<128x64xf32>
    %6 = tpu.matmul %4, %5, %cst {dimension_numbers = #tpu.dot_dimension_numbers<[1], [0], [0], [1], [0, 0, 1, 1], [], []>} : vector<128x256xbf16>, vector<256x64xbf16>, vector<128x64xf32> -> vector<128x64xf32>
    %7 = arith.addf %3, %6 : vector<128x64xf32>
    %c0_6 = arith.constant 0 : index
    %c0_7 = arith.constant 0 : index
    %8 = vector.load %arg8[%c0_6, %c0_7] : memref<128x64xf32, #tpu.memory_space<vmem>>, vector<128x64xf32>
    tpu.vector_store %arg8[%c0_6, %c0_7], %7 {strides = array<i32>} : memref<128x64xf32, #tpu.memory_space<vmem>>, vector<128x64xf32>,
    %c0_i32_8 = arith.constant 0 : i32
    %9 = arith.cmpi eq, %arg2, %c0_i32_8 : i32
    %10 = arith.extui %9 : i1 to i32
    %c0_i32_9 = arith.constant 0 : i32
    %11 = arith.cmpi ne, %10, %c0_i32_9 : i32
    scf.if %11 {
      %c0_10 = arith.constant 0 : index
      %c0_11 = arith.constant 0 : index
      %12 = vector.load %arg8[%c0_10, %c0_11] : memref<128x64xf32, #tpu.memory_space<vmem>>, vector<128x64xf32>
      %c0_12 = arith.constant 0 : index
      %c0_13 = arith.constant 0 : index
      %13 = vector.load %arg5[%c0_12, %c0_13] : memref<1x64xf32, #tpu.memory_space<vmem>>, vector<1x64xf32>
      %14 = vector.broadcast %13 : vector<1x64xf32> to vector<128x64xf32>
      %15 = arith.mulf %12, %14 : vector<128x64xf32>
      %c0_14 = arith.constant 0 : index
      %c0_15 = arith.constant 0 : index
      %16 = vector.load %arg6[%c0_14, %c0_15] : memref<1x64xf32, #tpu.memory_space<vmem>>, vector<1x64xf32>
      %17 = vector.broadcast %16 : vector<1x64xf32> to vector<128x64xf32>
      %18 = arith.addf %15, %17 : vector<128x64xf32>
      %cst_16 = arith.constant 0.000000e+00 : f32
      %19 = vector.broadcast %cst_16 : f32 to vector<128x64xf32>
      %20 = arith.maximumf %18, %19 : vector<128x64xf32>
      %21 = arith.truncf %20 : vector<128x64xf32> to vector<128x64xbf16>
      %c0_17 = arith.constant 0 : index
      %c0_18 = arith.constant 0 : index
      %22 = vector.load %arg7[%c0_17, %c0_18] : memref<128x64xbf16, #tpu.memory_space<vmem>>, vector<128x64xbf16>
      tpu.vector_store %arg7[%c0_17, %c0_18], %21 {strides = array<i32>} : memref<128x64xbf16, #tpu.memory_space<vmem>>, vector<128x64xbf16>,
    } else {
    }
    return
  }
  func.func @transform_0(%arg0: i32, %arg1: i32, %arg2: i32) -> (i32, i32) {
    %c0_i32 = arith.constant 0 : i32
    return %arg0, %arg2 : i32, i32
  }
  func.func @transform_1(%arg0: i32, %arg1: i32, %arg2: i32) -> (i32, i32) {
    %c0_i32 = arith.constant 0 : i32
    return %arg2, %arg1 : i32, i32
  }
  func.func @transform_2(%arg0: i32, %arg1: i32, %arg2: i32) -> (i32, i32) {
    %c0_i32 = arith.constant 0 : i32
    %c0_i32_0 = arith.constant 0 : i32
    return %c0_i32, %arg1 : i32, i32
  }
  func.func @transform_3(%arg0: i32, %arg1: i32, %arg2: i32) -> (i32, i32) {
    %c0_i32 = arith.constant 0 : i32
    %c0_i32_0 = arith.constant 0 : i32
    return %c0_i32, %arg1 : i32, i32
  }
  func.func @transform_4(%arg0: i32, %arg1: i32, %arg2: i32) -> (i32, i32) {
    %c0_i32 = arith.constant 0 : i32
    return %arg0, %arg1 : i32, i32
  }
}

</mosaic_0001>

<llo_original>
// kernel: tpu_custom_call.1
$region0: #{tpu_custom_call.1}
  #allocation0 [shape = 'u32[]', space=smem, size = 0x4, offset = 0x4, fixed_abs, tag = 'smem constant byte address 0x4 - core index']
  #allocation1 [shape = 'u32[144,128]{1,0:T(1,128)}', space=vmem, size = 0x12000, scoped, tag = 'internal scratch']
  #allocation2 [shape = 'f32[128,64]{1,0:T(8,128)}', space=vmem, size = 0x10000, scoped, tag = 'scratch operand']
  %s0 = inlined_call_operand.hbm [shape: bf16[512,256], index: 0, kind: input, shape index: {}]
  %s1 = inlined_call_operand.vmem [shape: bf16[256,64], index: 1, kind: input, shape index: {}]
  %s2 = inlined_call_operand.vmem [shape: f32[1,64], index: 2, kind: input, shape index: {}]
  %s3 = inlined_call_operand.vmem [shape: f32[1,64], index: 3, kind: input, shape index: {}]
  %s4 = inlined_call_operand.vmem [shape: bf16[512,64], index: 4, kind: output, shape index: {}]
  %s5 = sld [smem:[#allocation0]]
  $region61: #{tpu_custom_call.1} parent=0
    _
  %s7 = ssub.s32 1, %s5
  %s8 = scalar_select 0, %s7, %s5
  $region1: #{tpu_custom_call.1} parent=0
    #allocation3 [shape = 'u8[131072]{0}', space=vmem, size = 0x20000, scoped, tag = 'input window, operand 0']
    #allocation4 [shape = 's32[2]{0}', space=sflag, size = 0x8, scoped, tag = 'scoped memory for tpu_custom_call.1']
    %9 = vsyncpa [#allocation4], 0
    %s10 = scalar_lea.sflag [#allocation4], 1
    %11 = vsyncpa %s10, 0
    loop: start=0, step=1, limit=6
    $region2: #{tpu_custom_call.1} parent=1 // loop_pre_header
      _
    $region3: #{tpu_custom_call.1} parent=1 // loop_header
      %s13 = sphi 0, %s17
      %p14 = scmp.ge.s32.totalorder %s13, 6
      %s20 = sphi 0, %s39
      %s21 = sphi 0, %s35
      %s22 = sphi 0, %s31
      %s23 = sphi 0, %s20
      %s24 = sphi 0, %s21
      %s25 = sphi 0, %s22
      %s26 = sphi 0, %s23
      %s27 = sphi 0, %s24
      %s28 = sphi 0, %s25
      %s44 = sphi 0, %s46
      %s47 = sphi 0, %s44
      %s48 = sphi 0, %s47
      %s64 = sphi 0, %s48
      %s72 = sphi 0, %s74
      %s75 = sphi 0, %s72
      %s76 = sphi 0, %s75
      %s92 = sphi 0, %s76
      %s98 = sphi 0, %s100
      %s101 = sphi 0, %s98
      %s102 = sphi 0, %s101
      %s118 = sphi 0, %s102
      %s124 = sphi 0, %s126
      %s127 = sphi 0, %s124
      %s128 = sphi 0, %s127
      %s144 = sphi 0, %s128
      %s152 = sphi 0, %s154
      %s155 = sphi 0, %s152
      %s156 = sphi 0, %s155
      %s172 = sphi 0, %s156
    $region4: #{tpu_custom_call.1} parent=1 // loop_header_branch
      %16 = sbr.rel (%p14) target = $region8
    $region5: #{tpu_custom_call.1} parent=1 // loop_body
      %s18 = ssub.s32 %s13, 1
      %s19 = ssub.s32 %s13, 2
      %s29 = sadd.s32 1, %s22
      %p30 = scmp.ge.s32.totalorder %s29, 1
      %s31 = scalar_select %p30, 0, %s29
      %s32 = sadd.s32 1, %s21
      %s33 = scalar_select %p30, %s32, %s21
      %p34 = scmp.ge.s32.totalorder %s33, 1
      %s35 = scalar_select %p34, 0, %s33
      %s36 = sadd.s32 1, %s20
      %s37 = scalar_select %p34, %s36, %s20
      %p38 = scmp.ge.s32.totalorder %s37, 4
      %s39 = scalar_select %p38, 0, %s37
      %s40 = ssub.s32 %s20, %s39
      %s41 = ssub.s32 %s22, %s31
      %s42 = sor.u32 %s40, %s41
      %p43 = scmp.eq.s32.totalorder %s42, 0
      %s45 = sadd.s32 %s44, 1
      %s46 = scalar_select %p43, %s44, %s45
      %p49 = pneg %p43
      %p50 = scmp.eq.s32.totalorder %s13, 3
      %p51 = por %p49, %p50
      %p52 = scmp.ne.s32.totalorder %s44, %s47
      %p53 = scmp.eq.s32.totalorder %s13, 0
      %p54 = por %p52, %p53
      %p55 = scmp.ne.s32.totalorder %s44, %s47
      %p56 = scmp.eq.s32.totalorder %s18, 3
      %p57 = por %p55, %p56
      %p58 = scmp.ne.s32.totalorder %s47, %s48
      %p59 = scmp.eq.s32.totalorder %s18, 0
      %p60 = por %p58, %p59
      %p61 = scmp.ne.s32.totalorder %s47, %s48
      %p62 = scmp.eq.s32.totalorder %s19, 3
      %p63 = por %p61, %p62
      %p65 = scmp.ne.s32.totalorder %s48, %s64
      %p66 = scmp.eq.s32.totalorder %s19, 0
      %p67 = por %p65, %p66
      %s68 = ssub.s32 %s22, %s31
      %s69 = ssub.s32 %s21, %s35
      %s70 = sor.u32 %s68, %s69
      %p71 = scmp.eq.s32.totalorder %s70, 0
      %s73 = sadd.s32 %s72, 1
      %s74 = scalar_select %p71, %s72, %s73
      %p77 = pneg %p71
      %p78 = scmp.eq.s32.totalorder %s13, 3
      %p79 = por %p77, %p78
      %p80 = scmp.ne.s32.totalorder %s72, %s75
      %p81 = scmp.eq.s32.totalorder %s13, 0
      %p82 = por %p80, %p81
      %p83 = scmp.ne.s32.totalorder %s72, %s75
      %p84 = scmp.eq.s32.totalorder %s18, 3
      %p85 = por %p83, %p84
      %p86 = scmp.ne.s32.totalorder %s75, %s76
      %p87 = scmp.eq.s32.totalorder %s18, 0
      %p88 = por %p86, %p87
      %p89 = scmp.ne.s32.totalorder %s75, %s76
      %p90 = scmp.eq.s32.totalorder %s19, 3
      %p91 = por %p89, %p90
      %p93 = scmp.ne.s32.totalorder %s76, %s92
      %p94 = scmp.eq.s32.totalorder %s19, 0
      %p95 = por %p93, %p94
      %s96 = ssub.s32 %s21, %s35
      %p97 = scmp.eq.s32.totalorder %s96, 0
      %s99 = sadd.s32 %s98, 1
      %s100 = scalar_select %p97, %s98, %s99
      %p103 = pneg %p97
      %p104 = scmp.eq.s32.totalorder %s13, 3
      %p105 = por %p103, %p104
      %p106 = scmp.ne.s32.totalorder %s98, %s101
      %p107 = scmp.eq.s32.totalorder %s13, 0
      %p108 = por %p106, %p107
      %p109 = scmp.ne.s32.totalorder %s98, %s101
      %p110 = scmp.eq.s32.totalorder %s18, 3
      %p111 = por %p109, %p110
      %p112 = scmp.ne.s32.totalorder %s101, %s102
      %p113 = scmp.eq.s32.totalorder %s18, 0
      %p114 = por %p112, %p113
      %p115 = scmp.ne.s32.totalorder %s101, %s102
      %p116 = scmp.eq.s32.totalorder %s19, 3
      %p117 = por %p115, %p116
      %p119 = scmp.ne.s32.totalorder %s102, %s118
      %p120 = scmp.eq.s32.totalorder %s19, 0
      %p121 = por %p119, %p120
      %s122 = ssub.s32 %s21, %s35
      %p123 = scmp.eq.s32.totalorder %s122, 0
      %s125 = sadd.s32 %s124, 1
      %s126 = scalar_select %p123, %s124, %s125
      %p129 = pneg %p123
      %p130 = scmp.eq.s32.totalorder %s13, 3
      %p131 = por %p129, %p130
      %p132 = scmp.ne.s32.totalorder %s124, %s127
      %p133 = scmp.eq.s32.totalorder %s13, 0
      %p134 = por %p132, %p133
      %p135 = scmp.ne.s32.totalorder %s124, %s127
      %p136 = scmp.eq.s32.totalorder %s18, 3
      %p137 = por %p135, %p136
      %p138 = scmp.ne.s32.totalorder %s127, %s128
      %p139 = scmp.eq.s32.totalorder %s18, 0
      %p140 = por %p138, %p139
      %p141 = scmp.ne.s32.totalorder %s127, %s128
      %p142 = scmp.eq.s32.totalorder %s19, 3
      %p143 = por %p141, %p142
      %p145 = scmp.ne.s32.totalorder %s128, %s144
      %p146 = scmp.eq.s32.totalorder %s19, 0
      %p147 = por %p145, %p146
      %s148 = ssub.s32 %s20, %s39
      %s149 = ssub.s32 %s21, %s35
      %s150 = sor.u32 %s148, %s149
      %p151 = scmp.eq.s32.totalorder %s150, 0
      %s153 = sadd.s32 %s152, 1
      %s154 = scalar_select %p151, %s152, %s153
      %p157 = pneg %p151
      %p158 = scmp.eq.s32.totalorder %s13, 3
      %p159 = por %p157, %p158
      %p160 = scmp.ne.s32.totalorder %s152, %s155
      %p161 = scmp.eq.s32.totalorder %s13, 0
      %p162 = por %p160, %p161
      %p163 = scmp.ne.s32.totalorder %s152, %s155
      %p164 = scmp.eq.s32.totalorder %s18, 3
      %p165 = por %p163, %p164
      %p166 = scmp.ne.s32.totalorder %s155, %s156
      %p167 = scmp.eq.s32.totalorder %s18, 0
      %p168 = por %p166, %p167
      %p169 = scmp.ne.s32.totalorder %s155, %s156
      %p170 = scmp.eq.s32.totalorder %s19, 3
      %p171 = por %p169, %p170
      %p173 = scmp.ne.s32.totalorder %s156, %s172
      %p174 = scmp.eq.s32.totalorder %s19, 0
      %p175 = por %p173, %p174
      %p176 = scmp.le.s32.totalorder 1, %s13
      %p177 = scmp.lt.s32.totalorder %s13, 5
      %p178 = pnand %p176, %p177
      %p179 = pneg %p178
      // Predicated region
      $region9: #{tpu_custom_call.1} parent=5 // pred_check
        _
      $region10: #{tpu_custom_call.1} parent=5 // pred_check_branch
        %181 = sbr.rel (%p178) target = $region12
      $region11: #{tpu_custom_call.1} parent=5 // pred_region
        %s182 = ssub.s32 %s13, 1
        // Predicated region
        $region13: #{tpu_custom_call.1} parent=11 // pred_check
          %p183 = pneg %p88
        $region14: #{tpu_custom_call.1} parent=11 // pred_check_branch
          %185 = sbr.rel (%p183) target = $region16
        $region15: #{tpu_custom_call.1} parent=11 // pred_region
          %s186 = smul.u32 32, %s25
          %p187 = scmp.lt.s32.totalorder %s186, 31
          %s188 = scalar_select %p187, %s186, 31
          %p189 = scmp.lt.s32.totalorder %s24, 0
          %s190 = scalar_select %p189, %s24, 0
          %s191 = sadd.s32 %s190, %s188
          %s192 = smul.addr %s191, 4
          %s193 = scalar_lea.vmem %s1, %s192
          %s194 = smul.u32 32, %s25
        $region16: #{tpu_custom_call.1} parent=11 // pred_fallthru
          _
        // Predicated region
        $region17: #{tpu_custom_call.1} parent=11 // pred_check
          %p195 = pneg %p114
        $region18: #{tpu_custom_call.1} parent=11 // pred_check_branch
          %197 = sbr.rel (%p195) target = $region20
        $region19: #{tpu_custom_call.1} parent=11 // pred_region
          %p198 = scmp.lt.s32.totalorder %s24, 0
          %s199 = scalar_select %p198, %s24, 0
          %s200 = scalar_lea.vmem %s2, %s199
        $region20: #{tpu_custom_call.1} parent=11 // pred_fallthru
          _
        // Predicated region
        $region21: #{tpu_custom_call.1} parent=11 // pred_check
          %p201 = pneg %p140
        $region22: #{tpu_custom_call.1} parent=11 // pred_check_branch
          %203 = sbr.rel (%p201) target = $region24
        $region23: #{tpu_custom_call.1} parent=11 // pred_region
          %p204 = scmp.lt.s32.totalorder %s24, 0
          %s205 = scalar_select %p204, %s24, 0
          %s206 = scalar_lea.vmem %s3, %s205
        $region24: #{tpu_custom_call.1} parent=11 // pred_fallthru
          _
      $region12: #{tpu_custom_call.1} parent=5 // pred_fallthru
        _
      %p207 = scmp.lt.s32.totalorder %s13, 4
      // Predicated region
      $region25: #{tpu_custom_call.1} parent=5 // pred_check
        %p208 = pneg %p207
      $region26: #{tpu_custom_call.1} parent=5 // pred_check_branch
        %210 = sbr.rel (%p208) target = $region28
      $region27: #{tpu_custom_call.1} parent=5 // pred_region
        // Predicated region
        $region29: #{tpu_custom_call.1} parent=27 // pred_check
          %p211 = pneg %p54
        $region30: #{tpu_custom_call.1} parent=27 // pred_check_branch
          %213 = sbr.rel (%p211) target = $region32
        $region31: #{tpu_custom_call.1} parent=27 // pred_region
          %s214 = sand.u32 %s44, 1
          %s215 = scalar_lea.sflag [#allocation4], %s214
          %s216 = sand.u32 %s44, 1
          %s217 = smul.addr %s216, 128
          %s218 = scalar_lea.vmem [#allocation3], %s217
          %s219 = smul.u32 16, %s20
          %s220 = smul.u32 2, %s22
          %s222 = ssub.s32 2048, 2048
          %223 = vsyncadd %s215, %s222
          %s224 = smul.addr %s219, 2
          %s225 = sadd.s32 %s220, %s224
          %s226 = smul.addr %s225, 64
          %s227 = scalar_lea.hbm %s0, %s226
          %s228 = sshll.u32 %s218, 4
          %s229 = int_to_ptr.vmem [resolvable:$true] %s228
          %234 = dma.hbm_to_vmem [thread:$0]  %s227, 2048, %s229, %s215, 128, 128, 8
        $region32: #{tpu_custom_call.1} parent=27 // pred_fallthru
          _
      $region28: #{tpu_custom_call.1} parent=5 // pred_fallthru
        _
      %p235 = scmp.le.s32.totalorder 1, %s13
      %p236 = scmp.lt.s32.totalorder %s13, 5
      %p237 = pnand %p235, %p236
      %p238 = pneg %p237
      // Predicated region
      $region33: #{tpu_custom_call.1} parent=5 // pred_check
        _
      $region34: #{tpu_custom_call.1} parent=5 // pred_check_branch
        %240 = sbr.rel (%p237) target = $region36
      $region35: #{tpu_custom_call.1} parent=5 // pred_region
        %s241 = ssub.s32 %s13, 1
        %s242 = sand.u32 %s47, 1
        %s243 = scalar_lea.sflag [#allocation4], %s242
        %s244 = sand.u32 %s47, 1
        %s245 = smul.addr %s244, 128
        %s246 = scalar_lea.vmem [#allocation3], %s245
        // Predicated region
        $region37: #{tpu_custom_call.1} parent=35 // pred_check
          %p247 = pneg %p60
        $region38: #{tpu_custom_call.1} parent=35 // pred_check_branch
          %249 = sbr.rel (%p247) target = $region40
        $region39: #{tpu_custom_call.1} parent=35 // pred_region
          %250 = dma.done %s243, 2048
        $region40: #{tpu_custom_call.1} parent=35 // pred_fallthru
          _
        %s251 = sand.u32 %s47, 1
        %s252 = scalar_lea.sflag [#allocation4], %s251
        %s253 = sand.u32 %s47, 1
        %s254 = smul.addr %s253, 128
        %s255 = scalar_lea.vmem [#allocation3], %s254
        %p256 = pneg %p60
        %p257 = pneg %p57
        %s258 = smul.u32 32, %s25
        %p259 = scmp.lt.s32.totalorder %s258, 31
        %s260 = scalar_select %p259, %s258, 31
        %p261 = scmp.lt.s32.totalorder %s24, 0
        %s262 = scalar_select %p261, %s24, 0
        %s263 = sadd.s32 %s262, %s260
        %s264 = smul.addr %s263, 4
        %s265 = scalar_lea.vmem %s1, %s264
        %p266 = pneg %p88
        %p267 = pneg %p85
        %p268 = scmp.lt.s32.totalorder %s24, 0
        %s269 = scalar_select %p268, %s24, 0
        %s270 = scalar_lea.vmem %s2, %s269
        %p271 = pneg %p114
        %p272 = pneg %p111
        %p273 = scmp.lt.s32.totalorder %s24, 0
        %s274 = scalar_select %p273, %s24, 0
        %s275 = scalar_lea.vmem %s3, %s274
        %p276 = pneg %p140
        %p277 = pneg %p137
        %p278 = pneg %p168
        %p279 = pneg %p165
        %s280 = smul.u32 16, %s23
        %p281 = scmp.lt.s32.totalorder %s280, 63
        %s282 = scalar_select %p281, %s280, 63
        %p283 = scmp.lt.s32.totalorder %s24, 0
        %s284 = scalar_select %p283, %s24, 0
        %s285 = sadd.s32 %s284, %s282
        %s286 = smul.addr %s285, 4
        %s287 = scalar_lea.vmem %s4, %s286
        %s288 = smul.u32 16, %s23
        %s289 = smul.u32 2, %s25
        %s290 = smul.u32 32, %s25
        %p291 = scmp.lt.s32.totalorder %s290, 31
        %s292 = scalar_select %p291, %s290, 31
        %p293 = scmp.lt.s32.totalorder %s24, 0
        %s294 = scalar_select %p293, %s24, 0
        %s295 = sadd.s32 %s294, %s292
        %s296 = smul.addr %s295, 4
        %s297 = scalar_lea.vmem %s1, %s296
        %s298 = smul.u32 32, %s25
        %p299 = scmp.lt.s32.totalorder %s24, 0
        %s300 = scalar_select %p299, %s24, 0
        %s301 = scalar_lea.vmem %s2, %s300
        %p302 = scmp.lt.s32.totalorder %s24, 0
        %s303 = scalar_select %p302, %s24, 0
        %s304 = scalar_lea.vmem %s3, %s303
        %s305 = smul.u32 16, %s23
        %p306 = scmp.lt.s32.totalorder %s305, 63
        %s307 = scalar_select %p306, %s305, 63
        %p308 = scmp.lt.s32.totalorder %s24, 0
        %s309 = scalar_select %p308, %s24, 0
        %s310 = sadd.s32 %s309, %s307
        %s311 = smul.addr %s310, 4
        %s312 = scalar_lea.vmem %s4, %s311
        %s313 = smul.u32 16, %s23
        %p315 = scmp.eq.s32.totalorder %s25, 0
        // Predicated region
        $region41: #{tpu_custom_call.1} parent=35 // pred_check
          %p316 = pneg %p315
        $region42: #{tpu_custom_call.1} parent=35 // pred_check_branch
          %318 = sbr.rel (%p316) target = $region44
        $region43: #{tpu_custom_call.1} parent=35 // pred_region
          %vm319 = vcmask 523264
          %320 = vst.msk [vmem:[#allocation2] sm:$0xff] %vm319, 0.0
          %321 = vst.msk [vmem:[#allocation2 + $0x8] sm:$0xff] %vm319, 0.0
          %322 = vst.msk [vmem:[#allocation2 + $0x10] sm:$0xff] %vm319, 0.0
          %323 = vst.msk [vmem:[#allocation2 + $0x18] sm:$0xff] %vm319, 0.0
          %324 = vst.msk [vmem:[#allocation2 + $0x20] sm:$0xff] %vm319, 0.0
          %325 = vst.msk [vmem:[#allocation2 + $0x28] sm:$0xff] %vm319, 0.0
          %326 = vst.msk [vmem:[#allocation2 + $0x30] sm:$0xff] %vm319, 0.0
          %327 = vst.msk [vmem:[#allocation2 + $0x38] sm:$0xff] %vm319, 0.0
          %328 = vst.msk [vmem:[#allocation2 + $0x40] sm:$0xff] %vm319, 0.0
          %329 = vst.msk [vmem:[#allocation2 + $0x48] sm:$0xff] %vm319, 0.0
          %330 = vst.msk [vmem:[#allocation2 + $0x50] sm:$0xff] %vm319, 0.0
          %331 = vst.msk [vmem:[#allocation2 + $0x58] sm:$0xff] %vm319, 0.0
          %332 = vst.msk [vmem:[#allocation2 + $0x60] sm:$0xff] %vm319, 0.0
          %333 = vst.msk [vmem:[#allocation2 + $0x68] sm:$0xff] %vm319, 0.0
          %334 = vst.msk [vmem:[#allocation2 + $0x70] sm:$0xff] %vm319, 0.0
          %335 = vst.msk [vmem:[#allocation2 + $0x78] sm:$0xff] %vm319, 0.0
        $region44: #{tpu_custom_call.1} parent=35 // pred_fallthru
          _
        %v336 = vld [vmem:[#allocation2] sm:$0xff]
        %v337 = vld [vmem:[#allocation2 + $0x8] sm:$0xff]
        %v338 = vld [vmem:[#allocation2 + $0x10] sm:$0xff]
        %v339 = vld [vmem:[#allocation2 + $0x18] sm:$0xff]
        %v340 = vld [vmem:[#allocation2 + $0x20] sm:$0xff]
        %v341 = vld [vmem:[#allocation2 + $0x28] sm:$0xff]
        %v342 = vld [vmem:[#allocation2 + $0x30] sm:$0xff]
        %v343 = vld [vmem:[#allocation2 + $0x38] sm:$0xff]
        %v344 = vld [vmem:[#allocation2 + $0x40] sm:$0xff]
        %v345 = vld [vmem:[#allocation2 + $0x48] sm:$0xff]
        %v346 = vld [vmem:[#allocation2 + $0x50] sm:$0xff]
        %v347 = vld [vmem:[#allocation2 + $0x58] sm:$0xff]
        %v348 = vld [vmem:[#allocation2 + $0x60] sm:$0xff]
        %v349 = vld [vmem:[#allocation2 + $0x68] sm:$0xff]
        %v350 = vld [vmem:[#allocation2 + $0x70] sm:$0xff]
        %v351 = vld [vmem:[#allocation2 + $0x78] sm:$0xff]
        %v352 = vld [vmem:[%s246] sm:$0xff]
        %v353 = vld [vmem:[%s246 + $0x8] sm:$0xff]
        %v354 = vld [vmem:[%s246 + $0x10] sm:$0xff]
        %v355 = vld [vmem:[%s246 + $0x18] sm:$0xff]
        %v356 = vld [vmem:[%s246 + $0x20] sm:$0xff]
        %v357 = vld [vmem:[%s246 + $0x28] sm:$0xff]
        %v358 = vld [vmem:[%s246 + $0x30] sm:$0xff]
        %v359 = vld [vmem:[%s246 + $0x38] sm:$0xff]
        %v360 = vld [vmem:[%s246 + $0x40] sm:$0xff]
        %v361 = vld [vmem:[%s246 + $0x48] sm:$0xff]
        %v362 = vld [vmem:[%s246 + $0x50] sm:$0xff]
        %v363 = vld [vmem:[%s246 + $0x58] sm:$0xff]
        %v364 = vld [vmem:[%s246 + $0x60] sm:$0xff]
        %v365 = vld [vmem:[%s246 + $0x68] sm:$0xff]
        %v366 = vld [vmem:[%s246 + $0x70] sm:$0xff]
        %v367 = vld [vmem:[%s246 + $0x78] sm:$0xff]
        %v368 = vld [vmem:[%s297] sm:$0xf]
        %v369 = vld [vmem:[%s297 + $0x4] sm:$0xf]
        %v370 = vld [vmem:[%s297 + $0x8] sm:$0xf]
        %v371 = vld [vmem:[%s297 + $0xc] sm:$0xf]
        %v372 = vld [vmem:[%s297 + $0x10] sm:$0xf]
        %v373 = vld [vmem:[%s297 + $0x14] sm:$0xf]
        %v374 = vld [vmem:[%s297 + $0x18] sm:$0xf]
        %v375 = vld [vmem:[%s297 + $0x1c] sm:$0xf]
        %v376 = vld [vmem:[%s297 + $0x20] sm:$0xf]
        %v377 = vld [vmem:[%s297 + $0x24] sm:$0xf]
        %v378 = vld [vmem:[%s297 + $0x28] sm:$0xf]
        %v379 = vld [vmem:[%s297 + $0x2c] sm:$0xf]
        %v380 = vld [vmem:[%s297 + $0x30] sm:$0xf]
        %v381 = vld [vmem:[%s297 + $0x34] sm:$0xf]
        %v382 = vld [vmem:[%s297 + $0x38] sm:$0xf]
        %v383 = vld [vmem:[%s297 + $0x3c] sm:$0xf]
        %v384 = vld [vmem:[%s297 + $0x40] sm:$0xf]
        %v385 = vld [vmem:[%s297 + $0x44] sm:$0xf]
        %v386 = vld [vmem:[%s297 + $0x48] sm:$0xf]
        %v387 = vld [vmem:[%s297 + $0x4c] sm:$0xf]
        %v388 = vld [vmem:[%s297 + $0x50] sm:$0xf]
        %v389 = vld [vmem:[%s297 + $0x54] sm:$0xf]
        %v390 = vld [vmem:[%s297 + $0x58] sm:$0xf]
        %v391 = vld [vmem:[%s297 + $0x5c] sm:$0xf]
        %v392 = vld [vmem:[%s297 + $0x60] sm:$0xf]
        %v393 = vld [vmem:[%s297 + $0x64] sm:$0xf]
        %v394 = vld [vmem:[%s297 + $0x68] sm:$0xf]
        %v395 = vld [vmem:[%s297 + $0x6c] sm:$0xf]
        %v396 = vld [vmem:[%s297 + $0x70] sm:$0xf]
        %v397 = vld [vmem:[%s297 + $0x74] sm:$0xf]
        %v398 = vld [vmem:[%s297 + $0x78] sm:$0xf]
        %v399 = vld [vmem:[%s297 + $0x7c] sm:$0xf]
        %v416 = vunpack.c.l.b16 %v352
        %v417 = vunpack.c.h.b16 %v352
        %v418 = vunpack.c.l.b16 %v353
        %v419 = vunpack.c.h.b16 %v353
        %v420 = vunpack.c.l.b16 %v354
        %v421 = vunpack.c.h.b16 %v354
        %v422 = vunpack.c.l.b16 %v355
        %v423 = vunpack.c.h.b16 %v355
        %v424 = vunpack.c.l.b16 %v356
        %v425 = vunpack.c.h.b16 %v356
        %v426 = vunpack.c.l.b16 %v357
        %v427 = vunpack.c.h.b16 %v357
        %v428 = vunpack.c.l.b16 %v358
        %v429 = vunpack.c.h.b16 %v358
        %v430 = vunpack.c.l.b16 %v359
        %v431 = vunpack.c.h.b16 %v359
        %v432 = vunpack.c.l.b16 %v360
        %v433 = vunpack.c.h.b16 %v360
        %v434 = vunpack.c.l.b16 %v361
        %v435 = vunpack.c.h.b16 %v361
        %v436 = vunpack.c.l.b16 %v362
        %v437 = vunpack.c.h.b16 %v362
        %v438 = vunpack.c.l.b16 %v363
        %v439 = vunpack.c.h.b16 %v363
        %v440 = vunpack.c.l.b16 %v364
        %v441 = vunpack.c.h.b16 %v364
        %v442 = vunpack.c.l.b16 %v365
        %v443 = vunpack.c.h.b16 %v365
        %v444 = vunpack.c.l.b16 %v366
        %v445 = vunpack.c.h.b16 %v366
        %v446 = vunpack.c.l.b16 %v367
        %v447 = vunpack.c.h.b16 %v367
        %v448 = vpack.c.b16 %v418, %v416
        %v449 = vpack.c.b16 %v419, %v417
        %v450 = vpack.c.b16 %v422, %v420
        %v451 = vpack.c.b16 %v423, %v421
        %v452 = vpack.c.b16 %v426, %v424
        %v453 = vpack.c.b16 %v427, %v425
        %v454 = vpack.c.b16 %v430, %v428
        %v455 = vpack.c.b16 %v431, %v429
        %v456 = vpack.c.b16 %v434, %v432
        %v457 = vpack.c.b16 %v435, %v433
        %v458 = vpack.c.b16 %v438, %v436
        %v459 = vpack.c.b16 %v439, %v437
        %v460 = vpack.c.b16 %v442, %v440
        %v461 = vpack.c.b16 %v443, %v441
        %v462 = vpack.c.b16 %v446, %v444
        %v463 = vpack.c.b16 %v447, %v445
        %v512 = vunpack.c.l.b16 %v368
        %v513 = vunpack.c.l.b16 %v369
        %v514 = vunpack.c.l.b16 %v370
        %v515 = vunpack.c.l.b16 %v371
        %v516 = vunpack.c.l.b16 %v372
        %v517 = vunpack.c.l.b16 %v373
        %v518 = vunpack.c.l.b16 %v374
        %v519 = vunpack.c.l.b16 %v375
        %v520 = vunpack.c.l.b16 %v376
        %v521 = vunpack.c.l.b16 %v377
        %v522 = vunpack.c.l.b16 %v378
        %v523 = vunpack.c.l.b16 %v379
        %v524 = vunpack.c.l.b16 %v380
        %v525 = vunpack.c.l.b16 %v381
        %v526 = vunpack.c.l.b16 %v382
        %v527 = vunpack.c.l.b16 %v383
        %v528 = vunpack.c.l.b16 %v384
        %v529 = vunpack.c.l.b16 %v385
        %v530 = vunpack.c.l.b16 %v386
        %v531 = vunpack.c.l.b16 %v387
        %v532 = vunpack.c.l.b16 %v388
        %v533 = vunpack.c.l.b16 %v389
        %v534 = vunpack.c.l.b16 %v390
        %v535 = vunpack.c.l.b16 %v391
        %v536 = vunpack.c.l.b16 %v392
        %v537 = vunpack.c.l.b16 %v393
        %v538 = vunpack.c.l.b16 %v394
        %v539 = vunpack.c.l.b16 %v395
        %v540 = vunpack.c.l.b16 %v396
        %v541 = vunpack.c.l.b16 %v397
        %v542 = vunpack.c.l.b16 %v398
        %v543 = vunpack.c.l.b16 %v399
        %v544 = vpack.c.b16 %v513, %v512
        %v545 = vpack.c.b16 %v515, %v514
        %v546 = vpack.c.b16 %v517, %v516
        %v547 = vpack.c.b16 %v519, %v518
        %v548 = vpack.c.b16 %v521, %v520
        %v549 = vpack.c.b16 %v523, %v522
        %v550 = vpack.c.b16 %v525, %v524
        %v551 = vpack.c.b16 %v527, %v526
        %v552 = vpack.c.b16 %v529, %v528
        %v553 = vpack.c.b16 %v531, %v530
        %v554 = vpack.c.b16 %v533, %v532
        %v555 = vpack.c.b16 %v535, %v534
        %v556 = vpack.c.b16 %v537, %v536
        %v557 = vpack.c.b16 %v539, %v538
        %v558 = vpack.c.b16 %v541, %v540
        %v559 = vpack.c.b16 %v543, %v542
        %576 = vmatprep.subr.bf16.mxu0 0
        %577 = vmatpush1.bf16.msra.mxu0 %v544
        %578 = vmatprep.subr.bf16.mxu0 0
        %579 = vmatpush1.bf16.msra.mxu0 %v545
        %580 = vmatprep.subr.bf16.mxu0 0
        %581 = vmatpush1.bf16.msra.mxu0 %v546
        %582 = vmatprep.subr.bf16.mxu0 0
        %583 = vmatpush1.bf16.msra.mxu0 %v547
        %584 = vmatprep.subr.bf16.mxu0 0
        %585 = vmatpush1.bf16.msra.mxu0 %v548
        %586 = vmatprep.subr.bf16.mxu0 0
        %587 = vmatpush1.bf16.msra.mxu0 %v549
        %588 = vmatprep.subr.bf16.mxu0 0
        %589 = vmatpush1.bf16.msra.mxu0 %v550
        %590 = vmatprep.subr.bf16.mxu0 0
        %591 = vmatpush1.bf16.msra.mxu0 %v551
        %592 = vmatprep.subr.bf16.mxu0 0
        %593 = vmatpush1.bf16.msra.mxu0 %v552
        %594 = vmatprep.subr.bf16.mxu0 0
        %595 = vmatpush1.bf16.msra.mxu0 %v553
        %596 = vmatprep.subr.bf16.mxu0 0
        %597 = vmatpush1.bf16.msra.mxu0 %v554
        %598 = vmatprep.subr.bf16.mxu0 0
        %599 = vmatpush1.bf16.msra.mxu0 %v555
        %600 = vmatprep.subr.bf16.mxu0 0
        %601 = vmatpush1.bf16.msra.mxu0 %v556
        %602 = vmatprep.subr.bf16.mxu0 0
        %603 = vmatpush1.bf16.msra.mxu0 %v557
        %604 = vmatprep.subr.bf16.mxu0 0
        %605 = vmatpush1.bf16.msra.mxu0 %v558
        %606 = vmatprep.subr.bf16.mxu0 0
        %607 = vmatpush1.bf16.msra.mxu0 %v559
        %608 = vmatprep.mubr.bf16.mxu0 %v449
        %609 = vmatmul.mubr.bf16.gmra.mrb[0].mxu0 %v448
        %v610 = vpop.f32.mrb[0].mxu0
        %v611 = vadd.f32 0.0, %v610
        %v612 = vpop.f32.mrb[0].mxu0
        %v613 = vpop.f32.mrb[0].mxu0
        %v614 = vadd.f32 0.0, %v613
        %v615 = vpop.f32.mrb[0].mxu0
        %616 = vmatprep.mubr.bf16.mxu0 %v451
        %617 = vmatmul.mubr.bf16.gmra.mrb[0].mxu0 %v450
        %v618 = vpop.f32.mrb[0].mxu0
        %v619 = vadd.f32 0.0, %v618
        %v620 = vpop.f32.mrb[0].mxu0
        %v621 = vpop.f32.mrb[0].mxu0
        %v622 = vadd.f32 0.0, %v621
        %v623 = vpop.f32.mrb[0].mxu0
        %624 = vmatprep.mubr.bf16.mxu0 %v453
        %625 = vmatmul.mubr.bf16.gmra.mrb[0].mxu0 %v452
        %v626 = vpop.f32.mrb[0].mxu0
        %v627 = vadd.f32 0.0, %v626
        %v628 = vpop.f32.mrb[0].mxu0
        %v629 = vpop.f32.mrb[0].mxu0
        %v630 = vadd.f32 0.0, %v629
        %v631 = vpop.f32.mrb[0].mxu0
        %632 = vmatprep.mubr.bf16.mxu0 %v455
        %633 = vmatmul.mubr.bf16.gmra.mrb[0].mxu0 %v454
        %v634 = vpop.f32.mrb[0].mxu0
        %v635 = vadd.f32 0.0, %v634
        %v636 = vpop.f32.mrb[0].mxu0
        %v637 = vpop.f32.mrb[0].mxu0
        %v638 = vadd.f32 0.0, %v637
        %v639 = vpop.f32.mrb[0].mxu0
        %640 = vmatprep.mubr.bf16.mxu0 %v457
        %641 = vmatmul.mubr.bf16.gmra.mrb[0].mxu0 %v456
        %v642 = vpop.f32.mrb[0].mxu0
        %v643 = vadd.f32 0.0, %v642
        %v644 = vpop.f32.mrb[0].mxu0
        %v645 = vpop.f32.mrb[0].mxu0
        %v646 = vadd.f32 0.0, %v645
        %v647 = vpop.f32.mrb[0].mxu0
        %648 = vmatprep.mubr.bf16.mxu0 %v459
        %649 = vmatmul.mubr.bf16.gmra.mrb[0].mxu0 %v458
        %v650 = vpop.f32.mrb[0].mxu0
        %v651 = vadd.f32 0.0, %v650
        %v652 = vpop.f32.mrb[0].mxu0
        %v653 = vpop.f32.mrb[0].mxu0
        %v654 = vadd.f32 0.0, %v653
        %v655 = vpop.f32.mrb[0].mxu0
        %656 = vmatprep.mubr.bf16.mxu0 %v461
        %657 = vmatmul.mubr.bf16.gmra.mrb[0].mxu0 %v460
        %v658 = vpop.f32.mrb[0].mxu0
        %v659 = vadd.f32 0.0, %v658
        %v660 = vpop.f32.mrb[0].mxu0
        %v661 = vpop.f32.mrb[0].mxu0
        %v662 = vadd.f32 0.0, %v661
        %v663 = vpop.f32.mrb[0].mxu0
        %664 = vmatprep.mubr.bf16.mxu0 %v463
        %665 = vmatmul.mubr.bf16.gmra.mrb[0].mxu0 %v462
        %v666 = vpop.f32.mrb[0].mxu0
        %v667 = vadd.f32 0.0, %v666
        %v668 = vpop.f32.mrb[0].mxu0
        %v669 = vpop.f32.mrb[0].mxu0
        %v670 = vadd.f32 0.0, %v669
        %v671 = vpop.f32.mrb[0].mxu0
        %672 = vdwg.mxu0
        %v673 = vadd.f32 %v336, %v611
        %v674 = vadd.f32 %v337, %v614
        %v675 = vadd.f32 %v338, %v619
        %v676 = vadd.f32 %v339, %v622
        %v677 = vadd.f32 %v340, %v627
        %v678 = vadd.f32 %v341, %v630
        %v679 = vadd.f32 %v342, %v635
        %v680 = vadd.f32 %v343, %v638
        %v681 = vadd.f32 %v344, %v643
        %v682 = vadd.f32 %v345, %v646
        %v683 = vadd.f32 %v346, %v651
        %v684 = vadd.f32 %v347, %v654
        %v685 = vadd.f32 %v348, %v659
        %v686 = vadd.f32 %v349, %v662
        %v687 = vadd.f32 %v350, %v667
        %v688 = vadd.f32 %v351, %v670
        %vm689 = vcmask 523264
        %690 = vst.msk [vmem:[#allocation2] sm:$0xff] %vm689, %v673
        %691 = vst.msk [vmem:[#allocation2 + $0x8] sm:$0xff] %vm689, %v674
        %692 = vst.msk [vmem:[#allocation2 + $0x10] sm:$0xff] %vm689, %v675
        %693 = vst.msk [vmem:[#allocation2 + $0x18] sm:$0xff] %vm689, %v676
        %694 = vst.msk [vmem:[#allocation2 + $0x20] sm:$0xff] %vm689, %v677
        %695 = vst.msk [vmem:[#allocation2 + $0x28] sm:$0xff] %vm689, %v678
        %696 = vst.msk [vmem:[#allocation2 + $0x30] sm:$0xff] %vm689, %v679
        %697 = vst.msk [vmem:[#allocation2 + $0x38] sm:$0xff] %vm689, %v680
        %698 = vst.msk [vmem:[#allocation2 + $0x40] sm:$0xff] %vm689, %v681
        %699 = vst.msk [vmem:[#allocation2 + $0x48] sm:$0xff] %vm689, %v682
        %700 = vst.msk [vmem:[#allocation2 + $0x50] sm:$0xff] %vm689, %v683
        %701 = vst.msk [vmem:[#allocation2 + $0x58] sm:$0xff] %vm689, %v684
        %702 = vst.msk [vmem:[#allocation2 + $0x60] sm:$0xff] %vm689, %v685
        %703 = vst.msk [vmem:[#allocation2 + $0x68] sm:$0xff] %vm689, %v686
        %704 = vst.msk [vmem:[#allocation2 + $0x70] sm:$0xff] %vm689, %v687
        %705 = vst.msk [vmem:[#allocation2 + $0x78] sm:$0xff] %vm689, %v688
        // Predicated region
        $region45: #{tpu_custom_call.1} parent=35 // pred_check
          %p706 = pneg %p315
        $region46: #{tpu_custom_call.1} parent=35 // pred_check_branch
          %708 = sbr.rel (%p706) target = $region48
        $region47: #{tpu_custom_call.1} parent=35 // pred_region
          %v709 = vld [vmem:[#allocation2] sm:$0xff]
          %v710 = vld [vmem:[#allocation2 + $0x8] sm:$0xff]
          %v711 = vld [vmem:[#allocation2 + $0x10] sm:$0xff]
          %v712 = vld [vmem:[#allocation2 + $0x18] sm:$0xff]
          %v713 = vld [vmem:[#allocation2 + $0x20] sm:$0xff]
          %v714 = vld [vmem:[#allocation2 + $0x28] sm:$0xff]
          %v715 = vld [vmem:[#allocation2 + $0x30] sm:$0xff]
          %v716 = vld [vmem:[#allocation2 + $0x38] sm:$0xff]
          %v717 = vld [vmem:[#allocation2 + $0x40] sm:$0xff]
          %v718 = vld [vmem:[#allocation2 + $0x48] sm:$0xff]
          %v719 = vld [vmem:[#allocation2 + $0x50] sm:$0xff]
          %v720 = vld [vmem:[#allocation2 + $0x58] sm:$0xff]
          %v721 = vld [vmem:[#allocation2 + $0x60] sm:$0xff]
          %v722 = vld [vmem:[#allocation2 + $0x68] sm:$0xff]
          %v723 = vld [vmem:[#allocation2 + $0x70] sm:$0xff]
          %v724 = vld [vmem:[#allocation2 + $0x78] sm:$0xff]
          %v725 = vld [vmem:[%s301] sm:$0x1]
          %v727 = vlaneseq
          %v728 = vshrl.u32 %v727, 7
          %v729 = vsub.s32 0, %v728
          %v730 = vrot.slane %v725, %v729
          %v732 = vmul.f32 %v709, %v730
          %v733 = vmul.f32 %v710, %v730
          %v734 = vmul.f32 %v711, %v730
          %v735 = vmul.f32 %v712, %v730
          %v736 = vmul.f32 %v713, %v730
          %v737 = vmul.f32 %v714, %v730
          %v738 = vmul.f32 %v715, %v730
          %v739 = vmul.f32 %v716, %v730
          %v740 = vmul.f32 %v717, %v730
          %v741 = vmul.f32 %v718, %v730
          %v742 = vmul.f32 %v719, %v730
          %v743 = vmul.f32 %v720, %v730
          %v744 = vmul.f32 %v721, %v730
          %v745 = vmul.f32 %v722, %v730
          %v746 = vmul.f32 %v723, %v730
          %v747 = vmul.f32 %v724, %v730
          %v748 = vld [vmem:[%s304] sm:$0x1]
          %v750 = vlaneseq
          %v751 = vshrl.u32 %v750, 7
          %v752 = vsub.s32 0, %v751
          %v753 = vrot.slane %v748, %v752
          %v755 = vadd.f32 %v732, %v753
          %v756 = vadd.f32 %v733, %v753
          %v757 = vadd.f32 %v734, %v753
          %v758 = vadd.f32 %v735, %v753
          %v759 = vadd.f32 %v736, %v753
          %v760 = vadd.f32 %v737, %v753
          %v761 = vadd.f32 %v738, %v753
          %v762 = vadd.f32 %v739, %v753
          %v763 = vadd.f32 %v740, %v753
          %v764 = vadd.f32 %v741, %v753
          %v765 = vadd.f32 %v742, %v753
          %v766 = vadd.f32 %v743, %v753
          %v767 = vadd.f32 %v744, %v753
          %v768 = vadd.f32 %v745, %v753
          %v769 = vadd.f32 %v746, %v753
          %v770 = vadd.f32 %v747, %v753
          %v771 = vmax.f32 %v755, 0.0
          %v772 = vmax.f32 %v756, 0.0
          %v773 = vmax.f32 %v757, 0.0
          %v774 = vmax.f32 %v758, 0.0
          %v775 = vmax.f32 %v759, 0.0
          %v776 = vmax.f32 %v760, 0.0
          %v777 = vmax.f32 %v761, 0.0
          %v778 = vmax.f32 %v762, 0.0
          %v779 = vmax.f32 %v763, 0.0
          %v780 = vmax.f32 %v764, 0.0
          %v781 = vmax.f32 %v765, 0.0
          %v782 = vmax.f32 %v766, 0.0
          %v783 = vmax.f32 %v767, 0.0
          %v784 = vmax.f32 %v768, 0.0
          %v785 = vmax.f32 %v769, 0.0
          %v786 = vmax.f32 %v770, 0.0
          %v787 = vpack.c.bf16 %v772, %v771
          %v788 = vpack.c.bf16 %v774, %v773
          %v789 = vpack.c.bf16 %v776, %v775
          %v790 = vpack.c.bf16 %v778, %v777
          %v791 = vpack.c.bf16 %v780, %v779
          %v792 = vpack.c.bf16 %v782, %v781
          %v793 = vpack.c.bf16 %v784, %v783
          %v794 = vpack.c.bf16 %v786, %v785
          %v803 = vunpack.c.l.b16 %v787
          %v804 = vunpack.c.h.b16 %v787
          %v805 = vunpack.c.l.b16 %v788
          %v806 = vunpack.c.h.b16 %v788
          %v807 = vunpack.c.l.b16 %v789
          %v808 = vunpack.c.h.b16 %v789
          %v809 = vunpack.c.l.b16 %v790
          %v810 = vunpack.c.h.b16 %v790
          %v811 = vunpack.c.l.b16 %v791
          %v812 = vunpack.c.h.b16 %v791
          %v813 = vunpack.c.l.b16 %v792
          %v814 = vunpack.c.h.b16 %v792
          %v815 = vunpack.c.l.b16 %v793
          %v816 = vunpack.c.h.b16 %v793
          %v817 = vunpack.c.l.b16 %v794
          %v818 = vunpack.c.h.b16 %v794
          %v819 = vpack.c.b16 %v803, %v803
          %v820 = vpack.c.b16 %v804, %v804
          %v821 = vpack.c.b16 %v805, %v805
          %v822 = vpack.c.b16 %v806, %v806
          %v823 = vpack.c.b16 %v807, %v807
          %v824 = vpack.c.b16 %v808, %v808
          %v825 = vpack.c.b16 %v809, %v809
          %v826 = vpack.c.b16 %v810, %v810
          %v827 = vpack.c.b16 %v811, %v811
          %v828 = vpack.c.b16 %v812, %v812
          %v829 = vpack.c.b16 %v813, %v813
          %v830 = vpack.c.b16 %v814, %v814
          %v831 = vpack.c.b16 %v815, %v815
          %v832 = vpack.c.b16 %v816, %v816
          %v833 = vpack.c.b16 %v817, %v817
          %v834 = vpack.c.b16 %v818, %v818
          %vm851 = vcmask 519168
          %852 = vst.msk [vmem:[%s312] sm:$0xf] %vm851, %v819
          %853 = vst.msk [vmem:[%s312 + $0x4] sm:$0xf] %vm851, %v820
          %854 = vst.msk [vmem:[%s312 + $0x8] sm:$0xf] %vm851, %v821
          %855 = vst.msk [vmem:[%s312 + $0xc] sm:$0xf] %vm851, %v822
          %856 = vst.msk [vmem:[%s312 + $0x10] sm:$0xf] %vm851, %v823
          %857 = vst.msk [vmem:[%s312 + $0x14] sm:$0xf] %vm851, %v824
          %858 = vst.msk [vmem:[%s312 + $0x18] sm:$0xf] %vm851, %v825
          %859 = vst.msk [vmem:[%s312 + $0x1c] sm:$0xf] %vm851, %v826
          %860 = vst.msk [vmem:[%s312 + $0x20] sm:$0xf] %vm851, %v827
          %861 = vst.msk [vmem:[%s312 + $0x24] sm:$0xf] %vm851, %v828
          %862 = vst.msk [vmem:[%s312 + $0x28] sm:$0xf] %vm851, %v829
          %863 = vst.msk [vmem:[%s312 + $0x2c] sm:$0xf] %vm851, %v830
          %864 = vst.msk [vmem:[%s312 + $0x30] sm:$0xf] %vm851, %v831
          %865 = vst.msk [vmem:[%s312 + $0x34] sm:$0xf] %vm851, %v832
          %866 = vst.msk [vmem:[%s312 + $0x38] sm:$0xf] %vm851, %v833
          %867 = vst.msk [vmem:[%s312 + $0x3c] sm:$0xf] %vm851, %v834
        $region48: #{tpu_custom_call.1} parent=35 // pred_fallthru
          _
        %s868 = smul.u32 16, %s23
        %p869 = scmp.lt.s32.totalorder %s868, 63
        %s870 = scalar_select %p869, %s868, 63
        %p871 = scmp.lt.s32.totalorder %s24, 0
        %s872 = scalar_select %p871, %s24, 0
        %s873 = sadd.s32 %s872, %s870
        %s874 = smul.addr %s873, 4
        %s875 = scalar_lea.vmem %s4, %s874
        // Predicated region
        $region49: #{tpu_custom_call.1} parent=35 // pred_check
          %p876 = pneg %p165
        $region50: #{tpu_custom_call.1} parent=35 // pred_check_branch
          %878 = sbr.rel (%p876) target = $region52
        $region51: #{tpu_custom_call.1} parent=35 // pred_region
          %s879 = smul.u32 16, %s23
        $region52: #{tpu_custom_call.1} parent=35 // pred_fallthru
          _
      $region36: #{tpu_custom_call.1} parent=5 // pred_fallthru
        _
      %p880 = scmp.le.s32.totalorder 2, %s13
      // Predicated region
      $region53: #{tpu_custom_call.1} parent=5 // pred_check
        %p881 = pneg %p880
      $region54: #{tpu_custom_call.1} parent=5 // pred_check_branch
        %883 = sbr.rel (%p881) target = $region56
      $region55: #{tpu_custom_call.1} parent=5 // pred_region
        %s884 = ssub.s32 %s13, 2
        // Predicated region
        $region57: #{tpu_custom_call.1} parent=55 // pred_check
          %p885 = pneg %p171
        $region58: #{tpu_custom_call.1} parent=55 // pred_check_branch
          %887 = sbr.rel (%p885) target = $region60
        $region59: #{tpu_custom_call.1} parent=55 // pred_region
          %s888 = smul.u32 16, %s26
          %p889 = scmp.lt.s32.totalorder %s888, 63
          %s890 = scalar_select %p889, %s888, 63
          %p891 = scmp.lt.s32.totalorder %s27, 0
          %s892 = scalar_select %p891, %s27, 0
          %s893 = sadd.s32 %s892, %s890
          %s894 = smul.addr %s893, 4
          %s895 = scalar_lea.vmem %s4, %s894
        $region60: #{tpu_custom_call.1} parent=55 // pred_fallthru
          _
      $region56: #{tpu_custom_call.1} parent=5 // pred_fallthru
        _
    $region6: #{tpu_custom_call.1} parent=1 // loop_footer
      %s17 = sadd.s32 1, %s13
    $region7: #{tpu_custom_call.1} parent=1 // loop_footer_branch
      %12 = sbr.rel target = $region3
    $region8: #{tpu_custom_call.1} parent=1 // loop_exit
      _
    %896 = vsyncpa [#allocation4], 1
    %s897 = scalar_lea.sflag [#allocation4], 1
    %898 = vsyncpa %s897, 1

</llo_original>
